<compile_context>
chip_gen: v7x
topology: tpu7x:2x2x1
jax: 0.10.0
libtpu: 0.0.40
codegen_flags: <defaults>
</compile_context>

<pallas_src>
import functools

import jax
import jax.numpy as jnp
from jax.experimental import pallas as pl
from jax.experimental.pallas import tpu as pltpu


def _round_up(x, m):
    return ((x + m - 1) // m) * m


def _viewpoint_loss_tile_kernel(
    preds_ref, labels_ref, out_ref, *, batch, tile_b, labels_resident, use_mxu_reduce
):
    """One (tile_b, C) tile of rows -> one partial scalar: -sum_i logsm_i[label_i]."""
    i = pl.program_id(0)

    # Stream preds at native dtype; cast to f32 in-kernel (halves HBM bytes for bf16).
    p = preds_ref[...].astype(jnp.float32)                         # (TB, C)

    if labels_resident:
        # Labels are grid-resident (fetched once); slice this tile's rows.
        start = pl.multiple_of(i * tile_b, 8)
        labels = labels_ref[pl.ds(start, tile_b), :]               # (TB, 1) int32
    else:
        labels = labels_ref[...]                                   # (TB, 1) int32

    lane = jax.lax.broadcasted_iota(jnp.int32, p.shape, 1)         # (TB, C)
    masked_p = jnp.where(lane == labels, p, 0.0)                   # (TB, C)

    if use_mxu_reduce:
        # TODO(synk): enable only after a bundle dump confirms XLU/VPU-bound
        # reductions (v7x).  f32 operands + HIGHEST precision keep 1e-5 tol.
        def _lane_sum(v):
            ones = jnp.ones((v.shape[-1], 128), jnp.float32)
            r = jax.lax.dot_general(
                v, ones, (((1,), (0,)), ((), ())),
                precision=jax.lax.Precision.HIGHEST,
                preferred_element_type=jnp.float32)
            return r[:, :1]

        abs_sum = _lane_sum(jnp.abs(p))                            # (TB, 1)
        picked_p = _lane_sum(masked_p)                             # (TB, 1)
        recip = pl.reciprocal(abs_sum)                             # (TB, 1)
        lse = jnp.log(_lane_sum(jnp.exp(p * recip)))               # (TB, 1)
    else:
        # Two independent reductions (ILP), then a single fused exp pass for
        # the LSE.  x = p * recip feeds only the exp, so it is never a stored
        # full-tile temporary.  |x| <= 1 after L1 norm -> exp in [1/e, e],
        # so the max-subtraction in the log-sum-exp is safely dropped.
        abs_sum = jnp.sum(jnp.abs(p), axis=-1, keepdims=True)      # (TB, 1)
        picked_p = jnp.sum(masked_p, axis=-1, keepdims=True)       # (TB, 1)
        recip = pl.reciprocal(abs_sum)                             # approx=False: 1e-5 tol
        lse = jnp.log(jnp.sum(jnp.exp(p * recip), axis=-1, keepdims=True))

    # logsm[i, label_i] = p[i, label_i] * recip_i - lse_i  (reassociated pick).
    per_row = picked_p * recip - lse                               # (TB, 1)

    # Mask rows past the true batch size (last tile may be padded).  Must stay
    # a SELECT so padded-row NaN/Inf never propagates.
    row = i * tile_b + jax.lax.broadcasted_iota(jnp.int32, per_row.shape, 0)
    per_row = jnp.where(row < batch, per_row, 0.0)

    # Partial result for this tile, broadcast over the (1, 8, 128) block so the
    # store is lane-dense / unmasked.
    partial = -jnp.sum(per_row)                                    # rank-0 f32
    out_ref[...] = jnp.broadcast_to(partial, out_ref.shape)


def viewpoint_loss(preds, labels, *, class_period=360, mean=True, tile_b=2048,
                   use_mxu_reduce=False):
    """preds: (B, class_period) float (any dtype), labels: (B,) int -> (1,) float32."""
    B, C = preds.shape
    assert C == class_period, "preds last dim must equal class_period"

    itemsize = jnp.dtype(preds.dtype).itemsize
    # Dtype-aware tile cap (v7x 64 MiB physical VMEM is the binding case).
    max_tb = 4096 if itemsize >= 4 else 8192
    tb = min(_round_up(max(tile_b, 8), 8), max_tb, _round_up(B, 8))
    num_tiles = (B + tb - 1) // tb
    b_pad = num_tiles * tb

    # Labels: pad to b_pad rows so the grid-resident block is exactly the array.
    labels2d = labels.astype(jnp.int32).reshape(B, 1)
    if b_pad != B:
        labels2d = jnp.concatenate(
            [labels2d, jnp.zeros((b_pad - B, 1), jnp.int32)], axis=0)

    # Grid-resident labels (single DMA, constant index_map) when the padded
    # (b_pad, 128-lane) int32 VMEM footprint is small; per-tile blocks otherwise.
    labels_resident = b_pad * 512 <= (8 << 20)
    if labels_resident:
        labels_spec = pl.BlockSpec((b_pad, 1), lambda i: (0, 0))
    else:
        labels_spec = pl.BlockSpec((tb, 1), lambda i: (i, 0))

    # VMEM budget: 2x double-buffered native-dtype input tiles + ~4 full-tile
    # f32 temporaries + labels + slack; clamp to [32 MiB, 48 MiB] (48 MiB stays
    # inside v7x's 64 MiB physical; v5e/v6e have 128 MiB physical).
    c_pad = _round_up(C, 128)
    vmem_est = (2 * tb * c_pad * itemsize          # double-buffered preds tiles
                + 4 * tb * c_pad * 4               # in-kernel f32 temporaries
                + 2 * b_pad * 512                  # labels (lane-padded int32)
                + (2 << 20))                       # outputs + slack
    vmem_limit = int(min(max(vmem_est, 32 << 20), 48 << 20))

    kernel = functools.partial(
        _viewpoint_loss_tile_kernel, batch=B, tile_b=tb,
        labels_resident=labels_resident, use_mxu_reduce=use_mxu_reduce)

    partials = pl.pallas_call(
        kernel,
        out_shape=jax.ShapeDtypeStruct((num_tiles, 8, 128), jnp.float32),
        grid=(num_tiles,),
        in_specs=[
            pl.BlockSpec((tb, C), lambda i: (i, 0)),   # preds rows (native dtype)
            labels_spec,                               # labels (resident or per-tile)
        ],
        out_specs=pl.BlockSpec((1, 8, 128), lambda i: (i, 0, 0)),
        compiler_params=pltpu.CompilerParams(
            # Tiles are independent partial sums -> megacore / v7x dual-TC can
            # split the batch.  (If profiling shows serialization on v7x, this
            # design also permits an explicit CORE_PARALLEL leading axis.)
            dimension_semantics=("parallel",),
            vmem_limit_bytes=vmem_limit,
        ),
    )(preds, labels2d)

    # Tiny final reduction + mean scaling in plain XLA.
    total = jnp.sum(partials[:, 0, 0])
    if mean:
        total = total / jnp.float32(class_period)
    return total.reshape(1)


def _reference(preds, labels, *, class_period=360, mean=True):
    """Pure-JAX reference mirroring the PyTorch loop."""
    p = preds.astype(jnp.float32)
    x = p / jnp.sum(jnp.abs(p), axis=-1, keepdims=True)
    logsm = jax.nn.log_softmax(x, axis=-1)
    picked = jnp.take_along_axis(logsm, labels[:, None].astype(jnp.int32), axis=-1)[:, 0]
    loss = -jnp.sum(picked)
    if mean:
        loss = loss / class_period
    return loss.reshape(1)


if __name__ == "__main__":
    key = jax.random.PRNGKey(0)
    class_period = 360

    # Small case (single tile).
    B = 8
    kp, kl, kp2, kl2 = jax.random.split(key, 4)
    preds = jax.random.normal(kp, (B, class_period), dtype=jnp.float32)
    labels = jax.random.randint(kl, (B,), 0, class_period, dtype=jnp.int32)
    out = jax.block_until_ready(
        viewpoint_loss(preds, labels, class_period=class_period, mean=True))
    ref = _reference(preds, labels, class_period=class_period, mean=True)
    assert out.shape == (1,)
    assert jnp.allclose(out, ref, atol=1e-5, rtol=1e-5), (out, ref)

    # Non-divisible batch with a small forced tile: exercises multi-tile grid,
    # resident-labels slicing, and the padded-row mask on the last tile.
    B2 = 37
    preds2 = jax.random.normal(kp2, (B2, class_period), dtype=jnp.float32)
    labels2 = jax.random.randint(kl2, (B2,), 0, class_period, dtype=jnp.int32)
    out2 = jax.block_until_ready(
        viewpoint_loss(preds2, labels2, class_period=class_period, mean=True, tile_b=16))
    ref2 = _reference(preds2, labels2, class_period=class_period, mean=True)
    assert jnp.allclose(out2, ref2, atol=1e-5, rtol=1e-5), (out2, ref2)

    print("KERNEL_OK")
</pallas_src>

<mosaic_0001>
module attributes {stable_mosaic.version = 11 : i64} {
  func.func @_viewpoint_loss_tile_kernel(%arg0: i32, %arg1: memref<8x360xf32, #tpu.memory_space<vmem>>, %arg2: memref<8x1xi32, #tpu.memory_space<vmem>>, %arg3: memref<1x8x128xf32, #tpu.memory_space<vmem>>) attributes {dimension_semantics = [#tpu.dimension_semantics<parallel>], iteration_bounds = array<i64: 1>, scalar_prefetch = 0 : i64, scratch_operands = 0 : i64, tpu.core_type = #tpu.core_type<tc>, window_params = [{transform_indices = @transform_0, window_bounds = array<i64: 8, 360>}, {pipeline_mode = #tpu.pipeline_mode<synchronous>, transform_indices = @transform_1, window_bounds = array<i64: 8, 1>}, {transform_indices = @transform_2, window_bounds = array<i64: 1, 8, 128>}]} {
    %c0 = arith.constant 0 : index
    %c0_0 = arith.constant 0 : index
    %0 = vector.load %arg1[%c0, %c0_0] : memref<8x360xf32, #tpu.memory_space<vmem>>, vector<8x360xf32>
    %c8_i32 = arith.constant 8 : i32
    %1 = arith.muli %arg0, %c8_i32 : i32
    %2 = tpu.assume_multiple %1, 8 : i32
    %3 = arith.index_cast %2 : i32 to index
    %c0_1 = arith.constant 0 : index
    %4 = vector.load %arg2[%3, %c0_1] : memref<8x1xi32, #tpu.memory_space<vmem>>, vector<8x1xi32>
    %5 = tpu.iota {dimensions = array<i32: 1>} : vector<8x360xi32>
    %6 = vector.broadcast %4 : vector<8x1xi32> to vector<8x360xi32>
    %7 = arith.cmpi eq, %5, %6 : vector<8x360xi32>
    %cst = arith.constant 0.000000e+00 : f32
    %8 = vector.broadcast %cst : f32 to vector<8x360xf32>
    %9 = arith.select %7, %0, %8 : vector<8x360xi1>, vector<8x360xf32>
    %10 = math.absf %0 : vector<8x360xf32>
    %cst_2 = arith.constant dense<0.000000e+00> : vector<8xf32>
    %11 = vector.multi_reduction <add>, %10, %cst_2 [1] : vector<8x360xf32> to vector<8xf32>
    %12 = vector.shape_cast %11 : vector<8xf32> to vector<8x1xf32>
    %cst_3 = arith.constant dense<0.000000e+00> : vector<8xf32>
    %13 = vector.multi_reduction <add>, %9, %cst_3 [1] : vector<8x360xf32> to vector<8xf32>
    %14 = vector.shape_cast %13 : vector<8xf32> to vector<8x1xf32>
    %15 = tpu.reciprocal %12 : vector<8x1xf32> -> vector<8x1xf32>
    %16 = vector.broadcast %15 : vector<8x1xf32> to vector<8x360xf32>
    %17 = arith.mulf %0, %16 : vector<8x360xf32>
    %18 = math.exp %17 : vector<8x360xf32>
    %cst_4 = arith.constant dense<0.000000e+00> : vector<8xf32>
    %19 = vector.multi_reduction <add>, %18, %cst_4 [1] : vector<8x360xf32> to vector<8xf32>
    %20 = vector.shape_cast %19 : vector<8xf32> to vector<8x1xf32>
    %21 = math.log %20 : vector<8x1xf32>
    %22 = arith.mulf %14, %15 : vector<8x1xf32>
    %23 = arith.subf %22, %21 : vector<8x1xf32>
    %c8_i32_5 = arith.constant 8 : i32
    %24 = arith.muli %arg0, %c8_i32_5 : i32
    %25 = tpu.iota {dimensions = array<i32: 0>} : vector<8x1xi32>
    %26 = vector.broadcast %24 : i32 to vector<8x1xi32>
    %27 = arith.addi %26, %25 : vector<8x1xi32>
    %c8_i32_6 = arith.constant 8 : i32
    %28 = vector.broadcast %c8_i32_6 : i32 to vector<8x1xi32>
    %29 = arith.cmpi slt, %27, %28 : vector<8x1xi32>
    %cst_7 = arith.constant 0.000000e+00 : f32
    %30 = vector.broadcast %cst_7 : f32 to vector<8x1xf32>
    %31 = arith.select %29, %23, %30 : vector<8x1xi1>, vector<8x1xf32>
    %32 = vector.shape_cast %31 : vector<8x1xf32> to vector<1x8x1xf32>
    %cst_8 = arith.constant dense<0.000000e+00> : vector<1xf32>
    %33 = vector.multi_reduction <add>, %32, %cst_8 [1, 2] : vector<1x8x1xf32> to vector<1xf32>
    %34 = vector.shape_cast %33 : vector<1xf32> to vector<1x1x1xf32>
    %35 = vector.extract %34[0, 0, 0] : f32 from vector<1x1x1xf32>
    %cst_9 = arith.constant 0.000000e+00 : f32
    %36 = arith.subf %cst_9, %35 : f32
    %37 = vector.broadcast %36 : f32 to vector<1x8x128xf32>
    %c0_10 = arith.constant 0 : index
    %c0_11 = arith.constant 0 : index
    %c0_12 = arith.constant 0 : index
    %38 = vector.load %arg3[%c0_10, %c0_11, %c0_12] : memref<1x8x128xf32, #tpu.memory_space<vmem>>, vector<1x8x128xf32>
    tpu.vector_store %arg3[%c0_10, %c0_11, %c0_12], %37 {strides = array<i32>} : memref<1x8x128xf32, #tpu.memory_space<vmem>>, vector<1x8x128xf32>,
    return
  }
  func.func @transform_0(%arg0: i32) -> (i32, i32) {
    %c0_i32 = arith.constant 0 : i32
    %c0_i32_0 = arith.constant 0 : i32
    return %arg0, %c0_i32 : i32, i32
  }
  func.func @transform_1(%arg0: i32) -> (i32, i32) {
    %c0_i32 = arith.constant 0 : i32
    %c0_i32_0 = arith.constant 0 : i32
    %c0_i32_1 = arith.constant 0 : i32
    return %c0_i32, %c0_i32_0 : i32, i32
  }
  func.func @transform_2(%arg0: i32) -> (i32, i32, i32) {
    %c0_i32 = arith.constant 0 : i32
    %c0_i32_0 = arith.constant 0 : i32
    %c0_i32_1 = arith.constant 0 : i32
    return %arg0, %c0_i32, %c0_i32_0 : i32, i32, i32
  }
}

</mosaic_0001>

<llo_original>
// kernel: tpu_custom_call.1
$region0: #{tpu_custom_call.1}
  #allocation0 [shape = 'u32[]', space=smem, size = 0x4, offset = 0x4, fixed_abs, tag = 'smem constant byte address 0x4 - core index']
  #allocation1 [shape = 'u32[144,128]{1,0:T(1,128)}', space=vmem, size = 0x12000, scoped, tag = 'internal scratch']
  %s0 = inlined_call_operand.hbm [shape: f32[8,360], index: 0, kind: input, shape index: {}]
  %s1 = inlined_call_operand.vmem [shape: s32[8,1], index: 1, kind: input, shape index: {}]
  %s2 = inlined_call_operand.hbm [shape: f32[1,8,128], index: 2, kind: output, shape index: {}]
  %s3 = sld [smem:[#allocation0]]
  $region22: #{tpu_custom_call.1} parent=0
    _
  %s5 = ssub.s32 1, %s3
  %s6 = scalar_select 0, %s5, %s3
  $region1: #{tpu_custom_call.1} parent=0
    #allocation2 [shape = 'u8[12288]{0}', space=vmem, size = 0x3000, scoped, tag = 'input window, operand 0, single buffered']
    #allocation3 [shape = 's32[1]{0}', space=sflag, size = 0x4, scoped, tag = 'scoped memory for tpu_custom_call.1']
    #allocation4 [shape = 's32[1]{0}', space=sflag, size = 0x4, scoped, tag = 'scoped memory for tpu_custom_call.1']
    #allocation5 [shape = 'u8[4096]{0}', space=vmem, size = 0x1000, scoped, tag = 'output window, operand 0, single buffered']
    %7 = vsyncpa [#allocation3], 0
    %8 = vsyncpa [#allocation4], 0
    // Predicated region
    $region2: #{tpu_custom_call.1} parent=1 // pred_check
      _
    $region3: #{tpu_custom_call.1} parent=1 // pred_check_branch
      %10 = sbr.rel (0) target = $region5
    $region4: #{tpu_custom_call.1} parent=1 // pred_region
      %s12 = ssub.s32 384, 384
      %13 = vsyncadd [#allocation3], %s12
      %s15 = sshll.u32 [#allocation2], 4
      %s16 = int_to_ptr.vmem [resolvable:$true] %s15
      %18 = dma.hbm_to_vmem [thread:$0]  %s0, 384, %s16, [#allocation3]
    $region5: #{tpu_custom_call.1} parent=1 // pred_fallthru
      _
    // Predicated region
    $region6: #{tpu_custom_call.1} parent=1 // pred_check
      _
    $region7: #{tpu_custom_call.1} parent=1 // pred_check_branch
      %20 = sbr.rel (0) target = $region9
    $region8: #{tpu_custom_call.1} parent=1 // pred_region
      _
    $region9: #{tpu_custom_call.1} parent=1 // pred_fallthru
      _
    // Predicated region
    $region10: #{tpu_custom_call.1} parent=1 // pred_check
      _
    $region11: #{tpu_custom_call.1} parent=1 // pred_check_branch
      %22 = sbr.rel (0) target = $region13
    $region12: #{tpu_custom_call.1} parent=1 // pred_region
      %23 = dma.done [#allocation3], 384
    $region13: #{tpu_custom_call.1} parent=1 // pred_fallthru
      _
    %v24 = vld [vmem:[#allocation2] sm:$0xff]
    %v25 = vld [vmem:[#allocation2 + $0x8] sm:$0xff]
    %v26 = vld [vmem:[#allocation2 + $0x10] sm:$0xff]
    %s27 = smul.u32 0, 8
    %s28 = scalar_lea.vmem %s1, %s27
    %v29 = vld [vmem:[%s28] sm:$0xff]
    %v30 = vlaneseq
    %v31 = vand.u32 %v30, 127
    %v32 = vadd.s32 %v31, 128
    %v33 = vadd.s32 %v31, 256
    %34 = vset.pattern.permute.xlu0 0
    %35 = vperm.xlu0 %34, %v29
    %v36 = vpop.permute.xlu0 %35
    %vm37 = vcmp.eq.s32.totalorder %v31, %v36
    %vm38 = vcmp.eq.s32.totalorder %v32, %v36
    %vm39 = vcmp.eq.s32.totalorder %v33, %v36
    %v40 = vsel %vm37, %v24, 0.0
    %v41 = vsel %vm38, %v25, 0.0
    %v42 = vsel %vm39, %v26, 0.0
    %v43 = vand.u32 2147483647, %v24
    %v44 = vand.u32 2147483647, %v25
    %v45 = vand.u32 2147483647, %v26
    %v46 = vadd.f32 %v43, %v44
    %vm47 = vcmask 850944
    %v48 = vsel %vm47, %v45, 0.0
    %v49 = vadd.f32 %v46, %v48
    %50 = vadd.xlane.f32.xlu0 %v49
    %v51 = vpop.xlane.xlu0 %50
    %v52 = vadd.f32 %v40, %v41
    %v53 = vsel %vm47, %v42, 0.0
    %v54 = vadd.f32 %v52, %v53
    %55 = vadd.xlane.f32.xlu0 %v54
    %v56 = vpop.xlane.xlu0 %55
    %v57 = vrcp.pop %v51
    %v58 = vmul.f32 %v24, %v57
    %v59 = vmul.f32 %v25, %v57
    %v60 = vmul.f32 %v26, %v57
    %v61 = vmul.f32 %v58, 1.442695
    %v62 = vpow.pop %v61
    %v63 = vmul.f32 %v59, 1.442695
    %v64 = vpow.pop %v63
    %v65 = vmul.f32 %v60, 1.442695
    %v66 = vpow.pop %v65
    %v67 = vadd.f32 %v62, %v64
    %v68 = vsel %vm47, %v66, 0.0
    %v69 = vadd.f32 %v67, %v68
    %70 = vadd.xlane.f32.xlu0 %v69
    %v71 = vpop.xlane.xlu0 %70
    %v72 = vlog2.pop %v71
    %v73 = vmul.f32 %v72, 0.6931472
    %v74 = vmul.f32 %v56, %v57
    %v75 = vsub.f32 %v74, %v73
    %v76 = vlaneseq
    %v77 = vshrl.u32 %v76, 7
    %v78 = vstv %s27
    %v79 = vadd.s32 %v78, %v77
    %vm80 = vcmp.lt.s32.totalorder %v79, 8
    %v81 = vsel %vm80, %v75, 0.0
    %vm82 = vcmask 7168
    %v83 = vsel %vm82, %v81, 0.0
    %84 = vadd.xlane.f32.xlu0 %v83
    %v85 = vpop.xlane.xlu0 %84
    %v86 = vrot.slane %v85, 4
    %v87 = vadd.f32 %v85, %v86
    %v88 = vrot.slane %v87, 2
    %v89 = vadd.f32 %v87, %v88
    %v90 = vrot.slane %v89, 1
    %v91 = vadd.f32 %v89, %v90
    %s92 = vtos %v91
    %s93 = ssub.f32 0.0, %s92
    %v94 = vstv %s93
    %95 = vst [vmem:[#allocation5] sm:$0xff] %v94
    // Predicated region
    $region14: #{tpu_custom_call.1} parent=1 // pred_check
      _
    $region15: #{tpu_custom_call.1} parent=1 // pred_check_branch
      %97 = sbr.rel (0) target = $region17
    $region16: #{tpu_custom_call.1} parent=1 // pred_region
      %s99 = ssub.s32 128, 128
      %100 = vsyncadd [#allocation4], %s99
      %s102 = sshll.u32 [#allocation5], 4
      %s103 = int_to_ptr.vmem [resolvable:$true] %s102
      %105 = dma.vmem_to_hbm [thread:$0]  %s103, 128, %s2, [#allocation4]
    $region17: #{tpu_custom_call.1} parent=1 // pred_fallthru
      _
    // Predicated region
    $region18: #{tpu_custom_call.1} parent=1 // pred_check
      _
    $region19: #{tpu_custom_call.1} parent=1 // pred_check_branch
      %107 = sbr.rel (0) target = $region21
    $region20: #{tpu_custom_call.1} parent=1 // pred_region
      %108 = dma.done [#allocation4], 128
    $region21: #{tpu_custom_call.1} parent=1 // pred_fallthru
      _
    %109 = vsyncpa [#allocation3], 1
    %110 = vsyncpa [#allocation4], 1

</llo_original>
